<compile_context>
chip_gen: v6e
topology: v6e:2x2x1
jax: 0.10.0
libtpu: 0.0.40
codegen_flags: <defaults>
</compile_context>

<pallas_src>
import functools

import jax
import jax.numpy as jnp
from jax.experimental import pallas as pl
from jax.experimental.pallas import tpu as pltpu


_NEG_BIG = -1e30  # "effectively -inf" score bias for padded key columns


def _round_up(x, m):
    return (x + m - 1) // m * m


def _flash_attn_kernel(*refs, dkp, project_kv, compute_dtype):
    if project_kv:
        xq_ref, xkv_ref, wq_ref, wkv_ref, o_ref, q_scr, acc_scr, m_scr = refs
    else:
        xq_ref, kv_ref, wq_ref, o_ref, q_scr, acc_scr, m_scr = refs

    ki = pl.program_id(1)

    @pl.when(ki == 0)
    def _init():
        # Project this query tile once per qi (1/d_out_kq is folded into wq);
        # cache it in the MXU input dtype so QK^T runs on the bf16 MXU path.
        q = jnp.dot(xq_ref[...], wq_ref[...], preferred_element_type=jnp.float32)
        q_scr[...] = q.astype(q_scr.dtype)
        m_scr[...] = jnp.full(m_scr.shape, -jnp.inf, dtype=jnp.float32)
        acc_scr[...] = jnp.zeros(acc_scr.shape, dtype=jnp.float32)

    if project_kv:
        # Fused K|V projection for this kv tile: one wide MXU matmul.  The
        # augmented ones / padded-row-indicator columns of x_kv synthesize the
        # V row-sum lane and the -1e30 K padding marker, so no extra VPU work.
        kv = jnp.dot(xkv_ref[...], wkv_ref[...],
                     preferred_element_type=jnp.float32).astype(compute_dtype)
    else:
        kv = kv_ref[...]                    # precomputed, already compute_dtype
    k = kv[:, :dkp]                         # 128-aligned lane slices
    v = kv[:, dkp:]

    # Scores: contract the last dim of Q and K directly (no transpose).
    # Padded key columns already contain -1e30 via the K marker lane.
    s = jax.lax.dot_general(q_scr[...], k,
                            dimension_numbers=(((1,), (1,)), ((), ())),
                            preferred_element_type=jnp.float32)      # (TQ, TK)

    # Online (flash) softmax update; the row-sum rides along in acc lane 0
    # through V's ones column, so there is no per-step cross-lane jnp.sum.
    m_prev = m_scr[...]
    m_new = jnp.maximum(m_prev, jnp.max(s, axis=-1, keepdims=True))
    alpha = jnp.exp(m_prev - m_new)
    p = jnp.exp(s - m_new)
    acc_scr[...] = alpha * acc_scr[...] + jnp.dot(
        p.astype(compute_dtype), v, preferred_element_type=jnp.float32)
    m_scr[...] = m_new

    @pl.when(ki == pl.num_programs(1) - 1)
    def _finalize():
        # acc lane 0 holds the softmax denominator.  EUP approximate
        # reciprocal + one Newton step on a (TQ, 1) vector -> ~f32 accuracy.
        l = acc_scr[:, 0:1]
        inv_l = pl.reciprocal(l, approx=True)
        inv_l = inv_l * (2.0 - l * inv_l)
        o_ref[...] = (acc_scr[...] * inv_l).astype(o_ref.dtype)


def self_attention(x, W_query, W_key, W_value, d_out_kq, *,
                   tq_tile=256, tk_tile=512,
                   compute_dtype=jnp.bfloat16, precompute_kv=None):
    """x: (T, n_embd); W_*: (d_out, n_embd) like nn.Linear.weight (no bias)."""
    T, E = x.shape
    d_kq = W_query.shape[0]
    d_v = W_value.shape[0]
    out_dtype = x.dtype
    scale = 1.0 / float(d_out_kq)
    f32 = jnp.float32

    if compute_dtype is None:
        compute_dtype = x.dtype
    if precompute_kv is None:
        # Re-projecting K|V per query tile stops paying off as n_embd grows.
        precompute_kv = E >= 256

    # ---- tile selection (decoupled TQ / TK) --------------------------------
    tq = min(tq_tile, _round_up(T, 8))
    tk = min(tk_tile, _round_up(T, 8))
    # v7x shards the "parallel" query-tile axis across its 2 TensorCores:
    # keep at least 2 query tiles whenever the sequence allows it.
    if T > 8 and (T + tq - 1) // tq < 2:
        tq = max(8, _round_up((T + 1) // 2, 8))
    t_pq = _round_up(T, tq)
    t_pk = _round_up(T, tk)
    n_q, n_kv = t_pq // tq, t_pk // tk
    masked = t_pk != T

    # Head dims lane-padded to 128.  K reserves one dead lane for the padding
    # marker (only when needed); V reserves lane 0 for the row-sum column.
    dkp = _round_up(d_kq + (1 if masked else 0), 128)
    dvp = _round_up(d_v + 1, 128)

    x32 = x.astype(f32)
    wq_t = W_query.T.astype(f32) * scale        # fold 1/d_out_kq into Q weights
    wk_t = W_key.T.astype(f32)
    wv_t = W_value.T.astype(f32)

    # ---- Q-side operands ----------------------------------------------------
    xq = jnp.pad(x32, ((0, t_pq - T), (0, 0)))
    wq_blk = jnp.pad(wq_t, ((0, 0), (0, dkp - d_kq)))                 # (E, dkp)
    if masked:
        # Constant 1 in Q lane d_kq pairs with the -1e30 marker in K, so the
        # score matmul itself masks padded key columns (zero per-step cost).
        xq = jnp.concatenate([xq, jnp.ones((t_pq, 1), f32)], axis=1)
        q_marker_row = jnp.zeros((1, dkp), f32).at[0, d_kq].set(1.0)
        wq_blk = jnp.concatenate([wq_blk, q_marker_row], axis=0)      # (E+1, dkp)
    xq = xq.astype(compute_dtype)
    wq_blk = wq_blk.astype(compute_dtype)

    # ---- K|V-side operands --------------------------------------------------
    if not precompute_kv:
        xkv = jnp.pad(x32, ((0, t_pk - T), (0, 0)))
        cols = [xkv, jnp.ones((t_pk, 1), f32)]                 # ones -> V lane 0
        if masked:
            cols.append((jnp.arange(t_pk) >= T).astype(f32)[:, None])
        xkv = jnp.concatenate(cols, axis=1).astype(compute_dtype)

        wk_blk = jnp.pad(wk_t, ((0, 0), (0, dkp - d_kq)))                    # (E, dkp)
        wv_blk = jnp.concatenate(
            [jnp.zeros((E, 1), f32), wv_t, jnp.zeros((E, dvp - d_v - 1), f32)],
            axis=1)                                                          # (E, dvp)
        rows = [jnp.concatenate([wk_blk, wv_blk], axis=1)]                   # (E, dkp+dvp)
        rows.append(jnp.zeros((1, dkp + dvp), f32).at[0, dkp].set(1.0))      # ones row
        if masked:
            rows.append(jnp.zeros((1, dkp + dvp), f32).at[0, d_kq].set(_NEG_BIG))
        wkv_blk = jnp.concatenate(rows, axis=0).astype(compute_dtype)

        operands = (xq, xkv, wq_blk, wkv_blk)
        in_specs = [
            pl.BlockSpec((tq, xq.shape[1]), lambda qi, ki: (qi, 0)),   # x rows -> Q
            pl.BlockSpec((tk, xkv.shape[1]), lambda qi, ki: (ki, 0)),  # x rows -> K,V
            pl.BlockSpec(wq_blk.shape, lambda qi, ki: (0, 0)),         # Wq (resident)
            pl.BlockSpec(wkv_blk.shape, lambda qi, ki: (0, 0)),        # Wk|Wv (resident)
        ]
    else:
        # Project K|V once with XLA and stream tiles into the kernel by ki.
        k_blk = jnp.pad(x32 @ wk_t, ((0, t_pk - T), (0, dkp - d_kq)))
        if masked:
            k_blk = k_blk.at[T:, d_kq].set(_NEG_BIG)
        v_blk = jnp.concatenate(
            [jnp.ones((t_pk, 1), f32),
             jnp.pad(x32 @ wv_t, ((0, t_pk - T), (0, 0))),
             jnp.zeros((t_pk, dvp - d_v - 1), f32)], axis=1)
        kv_pre = jnp.concatenate([k_blk, v_blk], axis=1).astype(compute_dtype)

        operands = (xq, kv_pre, wq_blk)
        in_specs = [
            pl.BlockSpec((tq, xq.shape[1]), lambda qi, ki: (qi, 0)),
            pl.BlockSpec((tk, dkp + dvp), lambda qi, ki: (ki, 0)),
            pl.BlockSpec(wq_blk.shape, lambda qi, ki: (0, 0)),
        ]

    kernel = functools.partial(_flash_attn_kernel, dkp=dkp,
                               project_kv=not precompute_kv,
                               compute_dtype=compute_dtype)

    out_p = pl.pallas_call(
        kernel,
        out_shape=jax.ShapeDtypeStruct((t_pq, dvp), out_dtype),
        grid=(n_q, n_kv),
        in_specs=in_specs,
        out_specs=pl.BlockSpec((tq, dvp), lambda qi, ki: (qi, 0)),
        scratch_shapes=[
            pltpu.VMEM((tq, dkp), compute_dtype),   # cached (pre-scaled) Q tile
            pltpu.VMEM((tq, dvp), jnp.float32),     # accumulator (+ row-sum lane 0)
            pltpu.VMEM((tq, 1), jnp.float32),       # running max
        ],
        compiler_params=pltpu.CompilerParams(
            dimension_semantics=("parallel", "arbitrary"),
            vmem_limit_bytes=64 * 1024 * 1024),
    )(*operands)

    # Drop padded rows; V lane 0 is the (normalized-away) row-sum column.
    return out_p[:T, 1:1 + d_v]


def self_attention_ref(x, W_query, W_key, W_value, d_out_kq):
    """Pure-JAX reference mirroring the PyTorch forward."""
    keys = x @ W_key.T
    queries = x @ W_query.T
    values = x @ W_value.T
    scores = queries @ keys.T
    weights = jax.nn.softmax(scores / d_out_kq, axis=-1)
    return weights @ values


if __name__ == "__main__":
    n_embd, d_out_kq, d_out_v = 32, 16, 16

    key = jax.random.PRNGKey(0)
    kq, kk, kv, kx1, kx2, kx3 = jax.random.split(key, 6)
    W_query = jax.random.normal(kq, (d_out_kq, n_embd), jnp.float32) * 0.1
    W_key = jax.random.normal(kk, (d_out_kq, n_embd), jnp.float32) * 0.1
    W_value = jax.random.normal(kv, (d_out_v, n_embd), jnp.float32) * 0.1

    # Case 1: module-sized input (seq=8, n_embd=32), f32 MXU operands, tight check.
    x1 = jax.random.normal(kx1, (8, n_embd), jnp.float32)
    out1 = jax.block_until_ready(
        self_attention(x1, W_query, W_key, W_value, d_out_kq, compute_dtype=jnp.float32))
    ref1 = self_attention_ref(x1, W_query, W_key, W_value, d_out_kq)
    assert out1.shape == (8, d_out_v)
    assert jnp.allclose(out1, ref1, atol=1e-3, rtol=1e-3), "case 1 mismatch"

    # Case 2: ragged length -> data-folded padding mask, bf16 MXU operands,
    # 2 query tiles (v7x-friendly).
    x2 = jax.random.normal(kx2, (13, n_embd), jnp.float32)
    out2 = jax.block_until_ready(self_attention(x2, W_query, W_key, W_value, d_out_kq))
    ref2 = self_attention_ref(x2, W_query, W_key, W_value, d_out_kq)
    assert out2.shape == (13, d_out_v)
    assert jnp.allclose(out2, ref2, atol=2.5e-2, rtol=2.5e-2), "case 2 mismatch"

    # Case 3: precomputed-K|V path (auto-selected when n_embd >= 256).
    out3 = jax.block_until_ready(
        self_attention(x2, W_query, W_key, W_value, d_out_kq, precompute_kv=True))
    assert jnp.allclose(out3, ref2, atol=2.5e-2, rtol=2.5e-2), "case 3 mismatch"

    # Case 4: multi-tile online-softmax recurrence (3 kv steps, masked last), f32.
    x4 = jax.random.normal(kx3, (40, n_embd), jnp.float32)
    out4 = jax.block_until_ready(
        self_attention(x4, W_query, W_key, W_value, d_out_kq,
                       tq_tile=16, tk_tile=16, compute_dtype=jnp.float32))
    ref4 = self_attention_ref(x4, W_query, W_key, W_value, d_out_kq)
    assert jnp.allclose(out4, ref4, atol=1e-3, rtol=1e-3), "case 4 mismatch"

    print("KERNEL_OK")
</pallas_src>

<mosaic_0001>
module attributes {stable_mosaic.version = 11 : i64} {
  func.func @_flash_attn_kernel(%arg0: i32, %arg1: i32, %arg2: memref<8x32xf32, #tpu.memory_space<vmem>>, %arg3: memref<8x33xf32, #tpu.memory_space<vmem>>, %arg4: memref<32x128xf32, #tpu.memory_space<vmem>>, %arg5: memref<33x256xf32, #tpu.memory_space<vmem>>, %arg6: memref<8x128xf32, #tpu.memory_space<vmem>>, %arg7: memref<8x128xf32, #tpu.memory_space<vmem>>, %arg8: memref<8x128xf32, #tpu.memory_space<vmem>>, %arg9: memref<8x1xf32, #tpu.memory_space<vmem>>) attributes {dimension_semantics = [#tpu.dimension_semantics<parallel>, #tpu.dimension_semantics<arbitrary>], iteration_bounds = array<i64: 1, 1>, scalar_prefetch = 0 : i64, scratch_operands = 3 : i64, tpu.core_type = #tpu.core_type<tc>, window_params = [{transform_indices = @transform_0, window_bounds = array<i64: 8, 32>}, {transform_indices = @transform_1, window_bounds = array<i64: 8, 33>}, {pipeline_mode = #tpu.pipeline_mode<synchronous>, transform_indices = @transform_2, window_bounds = array<i64: 32, 128>}, {pipeline_mode = #tpu.pipeline_mode<synchronous>, transform_indices = @transform_3, window_bounds = array<i64: 33, 256>}, {transform_indices = @transform_4, window_bounds = array<i64: 8, 128>}]} {
    %c0_i32 = arith.constant 0 : i32
    %0 = arith.cmpi eq, %arg1, %c0_i32 : i32
    %1 = arith.extui %0 : i1 to i32
    %c0_i32_0 = arith.constant 0 : i32
    %2 = arith.cmpi ne, %1, %c0_i32_0 : i32
    scf.if %2 {
      %c0_19 = arith.constant 0 : index
      %c0_20 = arith.constant 0 : index
      %29 = vector.load %arg2[%c0_19, %c0_20] : memref<8x32xf32, #tpu.memory_space<vmem>>, vector<8x32xf32>
      %c0_21 = arith.constant 0 : index
      %c0_22 = arith.constant 0 : index
      %30 = vector.load %arg4[%c0_21, %c0_22] : memref<32x128xf32, #tpu.memory_space<vmem>>, vector<32x128xf32>
      %cst_23 = arith.constant dense<0.000000e+00> : vector<8x128xf32>
      %31 = tpu.matmul %29, %30, %cst_23 {dimension_numbers = #tpu.dot_dimension_numbers<[1], [0], [0], [1], [0, 0, 1, 1], [], []>} : vector<8x32xf32>, vector<32x128xf32>, vector<8x128xf32> -> vector<8x128xf32>
      %c0_24 = arith.constant 0 : index
      %c0_25 = arith.constant 0 : index
      %32 = vector.load %arg7[%c0_24, %c0_25] : memref<8x128xf32, #tpu.memory_space<vmem>>, vector<8x128xf32>
      tpu.vector_store %arg7[%c0_24, %c0_25], %31 {strides = array<i32>} : memref<8x128xf32, #tpu.memory_space<vmem>>, vector<8x128xf32>,
      %cst_26 = arith.constant 0xFF800000 : f32
      %33 = vector.broadcast %cst_26 : f32 to vector<8x1xf32>
      %c0_27 = arith.constant 0 : index
      %c0_28 = arith.constant 0 : index
      %34 = vector.load %arg9[%c0_27, %c0_28] : memref<8x1xf32, #tpu.memory_space<vmem>>, vector<8x1xf32>
      tpu.vector_store %arg9[%c0_27, %c0_28], %33 {strides = array<i32>} : memref<8x1xf32, #tpu.memory_space<vmem>>, vector<8x1xf32>,
      %cst_29 = arith.constant 0.000000e+00 : f32
      %35 = vector.broadcast %cst_29 : f32 to vector<8x128xf32>
      %c0_30 = arith.constant 0 : index
      %c0_31 = arith.constant 0 : index
      %36 = vector.load %arg8[%c0_30, %c0_31] : memref<8x128xf32, #tpu.memory_space<vmem>>, vector<8x128xf32>
      tpu.vector_store %arg8[%c0_30, %c0_31], %35 {strides = array<i32>} : memref<8x128xf32, #tpu.memory_space<vmem>>, vector<8x128xf32>,
    } else {
    }
    %c0 = arith.constant 0 : index
    %c0_1 = arith.constant 0 : index
    %3 = vector.load %arg3[%c0, %c0_1] : memref<8x33xf32, #tpu.memory_space<vmem>>, vector<8x33xf32>
    %c0_2 = arith.constant 0 : index
    %c0_3 = arith.constant 0 : index
    %4 = vector.load %arg5[%c0_2, %c0_3] : memref<33x256xf32, #tpu.memory_space<vmem>>, vector<33x256xf32>
    %cst = arith.constant dense<0.000000e+00> : vector<8x256xf32>
    %5 = tpu.matmul %3, %4, %cst {dimension_numbers = #tpu.dot_dimension_numbers<[1], [0], [0], [1], [0, 0, 1, 1], [], []>} : vector<8x33xf32>, vector<33x256xf32>, vector<8x256xf32> -> vector<8x256xf32>
    %6 = vector.extract_strided_slice %5 {offsets = [0, 0], sizes = [8, 128], strides = [1, 1]} : vector<8x256xf32> to vector<8x128xf32>
    %7 = vector.extract_strided_slice %5 {offsets = [0, 128], sizes = [8, 128], strides = [1, 1]} : vector<8x256xf32> to vector<8x128xf32>
    %c0_4 = arith.constant 0 : index
    %c0_5 = arith.constant 0 : index
    %8 = vector.load %arg7[%c0_4, %c0_5] : memref<8x128xf32, #tpu.memory_space<vmem>>, vector<8x128xf32>
    %cst_6 = arith.constant dense<0.000000e+00> : vector<8x8xf32>
    %9 = tpu.matmul %8, %6, %cst_6 {dimension_numbers = #tpu.dot_dimension_numbers<[1], [1], [0], [0], [0, 0, 1, 0], [], []>} : vector<8x128xf32>, vector<8x128xf32>, vector<8x8xf32> -> vector<8x8xf32>
    %c0_7 = arith.constant 0 : index
    %c0_8 = arith.constant 0 : index
    %10 = vector.load %arg9[%c0_7, %c0_8] : memref<8x1xf32, #tpu.memory_space<vmem>>, vector<8x1xf32>
    %cst_9 = arith.constant dense<0xFF800000> : vector<8xf32>
    %11 = vector.multi_reduction <maximumf>, %9, %cst_9 [1] : vector<8x8xf32> to vector<8xf32>
    %12 = vector.shape_cast %11 : vector<8xf32> to vector<8x1xf32>
    %13 = arith.maximumf %10, %12 : vector<8x1xf32>
    %14 = arith.subf %10, %13 : vector<8x1xf32>
    %15 = math.exp %14 : vector<8x1xf32>
    %16 = vector.broadcast %13 : vector<8x1xf32> to vector<8x8xf32>
    %17 = arith.subf %9, %16 : vector<8x8xf32>
    %18 = math.exp %17 : vector<8x8xf32>
    %c0_10 = arith.constant 0 : index
    %c0_11 = arith.constant 0 : index
    %19 = vector.load %arg8[%c0_10, %c0_11] : memref<8x128xf32, #tpu.memory_space<vmem>>, vector<8x128xf32>
    %20 = vector.broadcast %15 : vector<8x1xf32> to vector<8x128xf32>
    %21 = arith.mulf %20, %19 : vector<8x128xf32>
    %cst_12 = arith.constant dense<0.000000e+00> : vector<8x128xf32>
    %22 = tpu.matmul %18, %7, %cst_12 {dimension_numbers = #tpu.dot_dimension_numbers<[1], [0], [0], [1], [0, 0, 1, 1], [], []>} : vector<8x8xf32>, vector<8x128xf32>, vector<8x128xf32> -> vector<8x128xf32>
    %23 = arith.addf %21, %22 : vector<8x128xf32>
    %c0_13 = arith.constant 0 : index
    %c0_14 = arith.constant 0 : index
    %24 = vector.load %arg8[%c0_13, %c0_14] : memref<8x128xf32, #tpu.memory_space<vmem>>, vector<8x128xf32>
    tpu.vector_store %arg8[%c0_13, %c0_14], %23 {strides = array<i32>} : memref<8x128xf32, #tpu.memory_space<vmem>>, vector<8x128xf32>,
    %c0_15 = arith.constant 0 : index
    %c0_16 = arith.constant 0 : index
    %25 = vector.load %arg9[%c0_15, %c0_16] : memref<8x1xf32, #tpu.memory_space<vmem>>, vector<8x1xf32>
    tpu.vector_store %arg9[%c0_15, %c0_16], %13 {strides = array<i32>} : memref<8x1xf32, #tpu.memory_space<vmem>>, vector<8x1xf32>,
    %c0_i32_17 = arith.constant 0 : i32
    %26 = arith.cmpi eq, %arg1, %c0_i32_17 : i32
    %27 = arith.extui %26 : i1 to i32
    %c0_i32_18 = arith.constant 0 : i32
    %28 = arith.cmpi ne, %27, %c0_i32_18 : i32
    scf.if %28 {
      %c0_19 = arith.constant 0 : index
      %c0_20 = arith.constant 0 : index
      %29 = vector.load %arg8[%c0_19, %c0_20] : memref<8x128xf32, #tpu.memory_space<vmem>>, vector<8x1xf32>
      %30 = tpu.reciprocal %29 {approx = true} : vector<8x1xf32> -> vector<8x1xf32>
      %31 = arith.mulf %29, %30 : vector<8x1xf32>
      %cst_21 = arith.constant 2.000000e+00 : f32
      %32 = vector.broadcast %cst_21 : f32 to vector<8x1xf32>
      %33 = arith.subf %32, %31 : vector<8x1xf32>
      %34 = arith.mulf %30, %33 : vector<8x1xf32>
      %c0_22 = arith.constant 0 : index
      %c0_23 = arith.constant 0 : index
      %35 = vector.load %arg8[%c0_22, %c0_23] : memref<8x128xf32, #tpu.memory_space<vmem>>, vector<8x128xf32>
      %36 = vector.broadcast %34 : vector<8x1xf32> to vector<8x128xf32>
      %37 = arith.mulf %35, %36 : vector<8x128xf32>
      %c0_24 = arith.constant 0 : index
      %c0_25 = arith.constant 0 : index
      %38 = vector.load %arg6[%c0_24, %c0_25] : memref<8x128xf32, #tpu.memory_space<vmem>>, vector<8x128xf32>
      tpu.vector_store %arg6[%c0_24, %c0_25], %37 {strides = array<i32>} : memref<8x128xf32, #tpu.memory_space<vmem>>, vector<8x128xf32>,
    } else {
    }
    return
  }
  func.func @transform_0(%arg0: i32, %arg1: i32) -> (i32, i32) {
    %c0_i32 = arith.constant 0 : i32
    %c0_i32_0 = arith.constant 0 : i32
    return %arg0, %c0_i32 : i32, i32
  }
  func.func @transform_1(%arg0: i32, %arg1: i32) -> (i32, i32) {
    %c0_i32 = arith.constant 0 : i32
    %c0_i32_0 = arith.constant 0 : i32
    return %arg1, %c0_i32 : i32, i32
  }
  func.func @transform_2(%arg0: i32, %arg1: i32) -> (i32, i32) {
    %c0_i32 = arith.constant 0 : i32
    %c0_i32_0 = arith.constant 0 : i32
    %c0_i32_1 = arith.constant 0 : i32
    return %c0_i32, %c0_i32_0 : i32, i32
  }
  func.func @transform_3(%arg0: i32, %arg1: i32) -> (i32, i32) {
    %c0_i32 = arith.constant 0 : i32
    %c0_i32_0 = arith.constant 0 : i32
    %c0_i32_1 = arith.constant 0 : i32
    return %c0_i32, %c0_i32_0 : i32, i32
  }
  func.func @transform_4(%arg0: i32, %arg1: i32) -> (i32, i32) {
    %c0_i32 = arith.constant 0 : i32
    %c0_i32_0 = arith.constant 0 : i32
    return %arg0, %c0_i32 : i32, i32
  }
}

</mosaic_0001>

<llo_original>
// kernel: tpu_custom_call.1
$region0: #{tpu_custom_call.1}
  #allocation0 [shape = 'u32[]', space=smem, size = 0x4, offset = 0x4, fixed_abs, tag = 'smem constant byte address 0x4 - core index']
  #allocation1 [shape = 'u32[144,128]{1,0:T(1,128)}', space=vmem, size = 0x12000, scoped, tag = 'internal scratch']
  #allocation2 [shape = 'f32[8,128]{1,0:T(8,128)}', space=vmem, size = 0x1000, scoped, tag = 'scratch operand']
  #allocation3 [shape = 'f32[8,128]{1,0:T(8,128)}', space=vmem, size = 0x1000, scoped, tag = 'scratch operand']
  #allocation4 [shape = 'f32[8,1]{1,0:T(8,128)}', space=vmem, size = 0x1000, scoped, tag = 'scratch operand']
  %s0 = inlined_call_operand.hbm [shape: f32[8,32], index: 0, kind: input, shape index: {}]
  %s1 = inlined_call_operand.hbm [shape: f32[8,33], index: 1, kind: input, shape index: {}]
  %s2 = inlined_call_operand.hbm [shape: f32[32,128], index: 2, kind: input, shape index: {}]
  %s3 = inlined_call_operand.hbm [shape: f32[33,256], index: 3, kind: input, shape index: {}]
  %s4 = inlined_call_operand.hbm [shape: f32[8,128], index: 4, kind: output, shape index: {}]
  %s5 = sld [smem:[#allocation0]]
  $region50: #{tpu_custom_call.1} parent=0
    _
  %s7 = ssub.s32 1, %s5
  %s8 = scalar_select 0, %s7, %s5
  $region1: #{tpu_custom_call.1} parent=0
    #allocation5 [shape = 'u8[4096]{0}', space=vmem, size = 0x1000, scoped, tag = 'input window, operand 0, single buffered']
    #allocation6 [shape = 's32[1]{0}', space=sflag, size = 0x4, scoped, tag = 'scoped memory for tpu_custom_call.1']
    #allocation7 [shape = 's32[1]{0}', space=sflag, size = 0x4, scoped, tag = 'scoped memory for tpu_custom_call.1']
    #allocation8 [shape = 'u8[4096]{0}', space=vmem, size = 0x1000, scoped, tag = 'input window, operand 1, single buffered']
    #allocation9 [shape = 's32[1]{0}', space=sflag, size = 0x4, scoped, tag = 'scoped memory for tpu_custom_call.1']
    #allocation10 [shape = 'u8[16384]{0}', space=vmem, size = 0x4000, scoped, tag = 'input window, operand 2, single buffered']
    #allocation11 [shape = 'u8[40960]{0}', space=vmem, size = 0xa000, scoped, tag = 'input window, operand 3, single buffered']
    #allocation12 [shape = 's32[1]{0}', space=sflag, size = 0x4, scoped, tag = 'scoped memory for tpu_custom_call.1']
    #allocation13 [shape = 'u8[4096]{0}', space=vmem, size = 0x1000, scoped, tag = 'output window, operand 0, single buffered']
    %9 = vsyncpa [#allocation6], 0
    %10 = vsyncpa [#allocation9], 0
    %11 = vsyncpa [#allocation12], 0
    %12 = vsyncpa [#allocation7], 0
    // Predicated region
    $region2: #{tpu_custom_call.1} parent=1 // pred_check
      _
    $region3: #{tpu_custom_call.1} parent=1 // pred_check_branch
      %14 = sbr.rel (0) target = $region5
    $region4: #{tpu_custom_call.1} parent=1 // pred_region
      %s16 = ssub.s32 128, 128
      %17 = vsyncadd [#allocation6], %s16
      %s19 = sshll.u32 [#allocation5], 4
      %s20 = int_to_ptr.vmem [resolvable:$true] %s19
      %22 = dma.hbm_to_vmem [thread:$0]  %s0, 128, %s20, [#allocation6]
    $region5: #{tpu_custom_call.1} parent=1 // pred_fallthru
      _
    // Predicated region
    $region6: #{tpu_custom_call.1} parent=1 // pred_check
      _
    $region7: #{tpu_custom_call.1} parent=1 // pred_check_branch
      %24 = sbr.rel (0) target = $region9
    $region8: #{tpu_custom_call.1} parent=1 // pred_region
      %s26 = ssub.s32 128, 128
      %27 = vsyncadd [#allocation9], %s26
      %s29 = sshll.u32 [#allocation8], 4
      %s30 = int_to_ptr.vmem [resolvable:$true] %s29
      %32 = dma.hbm_to_vmem [thread:$0]  %s1, 128, %s30, [#allocation9]
    $region9: #{tpu_custom_call.1} parent=1 // pred_fallthru
      _
    // Predicated region
    $region10: #{tpu_custom_call.1} parent=1 // pred_check
      _
    $region11: #{tpu_custom_call.1} parent=1 // pred_check_branch
      %34 = sbr.rel (0) target = $region13
    $region12: #{tpu_custom_call.1} parent=1 // pred_region
      %s36 = ssub.s32 512, 512
      %37 = vsyncadd [#allocation9], %s36
      %s38 = sshll.u32 [#allocation10], 4
      %s39 = int_to_ptr.vmem [resolvable:$true] %s38
      %44 = dma.hbm_to_vmem [thread:$0]  %s2, 512, %s39, [#allocation9], 128, 128, 8
    $region13: #{tpu_custom_call.1} parent=1 // pred_fallthru
      _
    // Predicated region
    $region14: #{tpu_custom_call.1} parent=1 // pred_check
      _
    $region15: #{tpu_custom_call.1} parent=1 // pred_check_branch
      %46 = sbr.rel (0) target = $region17
    $region16: #{tpu_custom_call.1} parent=1 // pred_region
      %s48 = ssub.s32 1280, 1280
      %49 = vsyncadd [#allocation12], %s48
      %s50 = sshll.u32 [#allocation11], 4
      %s51 = int_to_ptr.vmem [resolvable:$true] %s50
      %56 = dma.hbm_to_vmem [thread:$0]  %s3, 1280, %s51, [#allocation12], 256, 256, 16
    $region17: #{tpu_custom_call.1} parent=1 // pred_fallthru
      _
    // Predicated region
    $region18: #{tpu_custom_call.1} parent=1 // pred_check
      _
    $region19: #{tpu_custom_call.1} parent=1 // pred_check_branch
      %58 = sbr.rel (0) target = $region21
    $region20: #{tpu_custom_call.1} parent=1 // pred_region
      %59 = dma.done [#allocation6], 128
    $region21: #{tpu_custom_call.1} parent=1 // pred_fallthru
      _
    // Predicated region
    $region22: #{tpu_custom_call.1} parent=1 // pred_check
      _
    $region23: #{tpu_custom_call.1} parent=1 // pred_check_branch
      %61 = sbr.rel (0) target = $region25
    $region24: #{tpu_custom_call.1} parent=1 // pred_region
      %62 = dma.done [#allocation9], 128
    $region25: #{tpu_custom_call.1} parent=1 // pred_fallthru
      _
    // Predicated region
    $region26: #{tpu_custom_call.1} parent=1 // pred_check
      _
    $region27: #{tpu_custom_call.1} parent=1 // pred_check_branch
      %64 = sbr.rel (0) target = $region29
    $region28: #{tpu_custom_call.1} parent=1 // pred_region
      %65 = dma.done [#allocation9], 512
    $region29: #{tpu_custom_call.1} parent=1 // pred_fallthru
      _
    // Predicated region
    $region30: #{tpu_custom_call.1} parent=1 // pred_check
      _
    $region31: #{tpu_custom_call.1} parent=1 // pred_check_branch
      %67 = sbr.rel (0) target = $region33
    $region32: #{tpu_custom_call.1} parent=1 // pred_region
      %68 = dma.done [#allocation12], 1280
    $region33: #{tpu_custom_call.1} parent=1 // pred_fallthru
      _
    %p69 = scmp.eq.s32.totalorder 0, 0
    // Predicated region
    $region34: #{tpu_custom_call.1} parent=1 // pred_check
      %p70 = pneg %p69
    $region35: #{tpu_custom_call.1} parent=1 // pred_check_branch
      %72 = sbr.rel (%p70) target = $region37
    $region36: #{tpu_custom_call.1} parent=1 // pred_region
      %v73 = vld [vmem:[#allocation5] sm:$0xff]
      %v74 = vld [vmem:[#allocation10] sm:$0xff]
      %v75 = vld [vmem:[#allocation10 + $0x8] sm:$0xff]
      %v76 = vld [vmem:[#allocation10 + $0x10] sm:$0xff]
      %v77 = vld [vmem:[#allocation10 + $0x18] sm:$0xff]
      %vm78 = vcmask 261120
      %v80 = vsel %vm78, %v73, 0
      %82 = vmatprep.subr.mxu0 0.0
      %83 = vmatpush1.msra.mxu0 0.0
      %84 = vmatprep.subr.mxu0 0.0
      %85 = vmatpush1.msra.mxu0 0.0
      %86 = vmatprep.subr.mxu0 0.0
      %87 = vmatpush1.msra.mxu0 0.0
      %88 = vmatprep.subr.mxu0 0.0
      %89 = vmatpush1.msra.mxu0 0.0
      %90 = vmatprep.subr.mxu0 0.0
      %91 = vmatpush1.msra.mxu0 0.0
      %92 = vmatprep.subr.mxu0 0.0
      %93 = vmatpush1.msra.mxu0 0.0
      %94 = vmatprep.subr.mxu0 0.0
      %95 = vmatpush1.msra.mxu0 0.0
      %96 = vmatprep.subr.mxu0 0.0
      %97 = vmatpush1.msra.mxu0 0.0
      %98 = vmatprep.subr.mxu0 0.0
      %99 = vmatpush1.msra.mxu0 0.0
      %100 = vmatprep.subr.mxu0 0.0
      %101 = vmatpush1.msra.mxu0 0.0
      %102 = vmatprep.subr.mxu0 0.0
      %103 = vmatpush1.msra.mxu0 0.0
      %104 = vmatprep.subr.mxu0 0.0
      %105 = vmatpush1.msra.mxu0 0.0
      %106 = vmatprep.subr.mxu0 0.0
      %107 = vmatpush1.msra.mxu0 %v77
      %108 = vmatprep.subr.mxu0 0.0
      %109 = vmatpush1.msra.mxu0 %v76
      %110 = vmatprep.subr.mxu0 0.0
      %111 = vmatpush1.msra.mxu0 %v75
      %112 = vmatprep.subr.mxu0 0.0
      %113 = vmatpush1.msra.mxu0 %v74
      %114 = vmatprep.subr.mxu0 0.0
      %115 = vmatpush2.msra.mxu0 0.0
      %116 = vmatprep.subr.mxu0 0.0
      %117 = vmatpush2.msra.mxu0 0.0
      %118 = vmatprep.subr.mxu0 0.0
      %119 = vmatpush2.msra.mxu0 0.0
      %120 = vmatprep.subr.mxu0 0.0
      %121 = vmatpush2.msra.mxu0 0.0
      %122 = vmatprep.subr.mxu0 0.0
      %123 = vmatpush2.msra.mxu0 0.0
      %124 = vmatprep.subr.mxu0 0.0
      %125 = vmatpush2.msra.mxu0 0.0
      %126 = vmatprep.subr.mxu0 0.0
      %127 = vmatpush2.msra.mxu0 0.0
      %128 = vmatprep.subr.mxu0 0.0
      %129 = vmatpush2.msra.mxu0 0.0
      %130 = vmatprep.subr.mxu0 0.0
      %131 = vmatpush2.msra.mxu0 0.0
      %132 = vmatprep.subr.mxu0 0.0
      %133 = vmatpush2.msra.mxu0 0.0
      %134 = vmatprep.subr.mxu0 0.0
      %135 = vmatpush2.msra.mxu0 0.0
      %136 = vmatprep.subr.mxu0 0.0
      %137 = vmatpush2.msra.mxu0 0.0
      %138 = vmatprep.subr.mxu0 0.0
      %139 = vmatpush2.msra.mxu0 0.0
      %140 = vmatprep.subr.mxu0 0.0
      %141 = vmatpush2.msra.mxu0 0.0
      %142 = vmatprep.subr.mxu0 0.0
      %143 = vmatpush2.msra.mxu0 0.0
      %144 = vmatprep.subr.mxu0 0.0
      %145 = vmatpush2.msra.mxu0 0.0
      %146 = vmatprep.mubr.f32.mxu0 0.0
      %147 = vmatmul.mubr.f32.gmra.mxu0 %v80
      %v148 = vpop.f32.mrf.mxu0
      %v149 = vadd.f32 0.0, %v148
      %v150 = vpop.f32.mrf.mxu0
      %151 = vdwg.mxu0
      %152 = vst [vmem:[#allocation2] sm:$0xff] %v149
      %vm153 = vcmask 7168
      %154 = vst.msk [vmem:[#allocation4] sm:$0xff] %vm153, -inf
      %155 = vst [vmem:[#allocation3] sm:$0xff] 0.0
    $region37: #{tpu_custom_call.1} parent=1 // pred_fallthru
      _
    %v156 = vld [vmem:[#allocation8] sm:$0xff]
    %v157 = vld [vmem:[#allocation11] sm:$0xff]
    %v158 = vld [vmem:[#allocation11 + $0x8] sm:$0xff]
    %v159 = vld [vmem:[#allocation11 + $0x10] sm:$0xff]
    %v160 = vld [vmem:[#allocation11 + $0x18] sm:$0xff]
    %v161 = vld [vmem:[#allocation11 + $0x20] sm:$0xff]
    %v162 = vld [vmem:[#allocation11 + $0x28] sm:$0xff]
    %v163 = vld [vmem:[#allocation11 + $0x30] sm:$0xff]
    %v164 = vld [vmem:[#allocation11 + $0x38] sm:$0xff]
    %v165 = vld [vmem:[#allocation11 + $0x40] sm:$0x1]
    %v166 = vld [vmem:[#allocation11 + $0x48] sm:$0x1]
    %vm167 = vcmask 269312
    %v169 = vsel %vm167, %v156, 0
    %vm171 = vcmask 1040384
    %v173 = vsel %vm171, %v165, 0
    %v176 = vsel %vm171, %v166, 0
    %178 = vmatprep.subr.mxu0 0.0
    %179 = vmatpush1.msra.mxu0 0.0
    %180 = vmatprep.subr.mxu0 0.0
    %181 = vmatpush1.msra.mxu0 0.0
    %182 = vmatprep.subr.mxu0 0.0
    %183 = vmatpush1.msra.mxu0 0.0
    %184 = vmatprep.subr.mxu0 0.0
    %185 = vmatpush1.msra.mxu0 0.0
    %186 = vmatprep.subr.mxu0 0.0
    %187 = vmatpush1.msra.mxu0 0.0
    %188 = vmatprep.subr.mxu0 0.0
    %189 = vmatpush1.msra.mxu0 0.0
    %190 = vmatprep.subr.mxu0 0.0
    %191 = vmatpush1.msra.mxu0 0.0
    %192 = vmatprep.subr.mxu0 0.0
    %193 = vmatpush1.msra.mxu0 0.0
    %194 = vmatprep.subr.mxu0 0.0
    %195 = vmatpush1.msra.mxu0 0.0
    %196 = vmatprep.subr.mxu0 0.0
    %197 = vmatpush1.msra.mxu0 0.0
    %198 = vmatprep.subr.mxu0 0.0
    %199 = vmatpush1.msra.mxu0 0.0
    %200 = vmatprep.subr.mxu0 %v176
    %201 = vmatpush1.msra.mxu0 %v173
    %202 = vmatprep.subr.mxu0 %v164
    %203 = vmatpush1.msra.mxu0 %v163
    %204 = vmatprep.subr.mxu0 %v162
    %205 = vmatpush1.msra.mxu0 %v161
    %206 = vmatprep.subr.mxu0 %v160
    %207 = vmatpush1.msra.mxu0 %v159
    %208 = vmatprep.subr.mxu0 %v158
    %209 = vmatpush1.msra.mxu0 %v157
    %210 = vmatprep.subr.mxu0 0.0
    %211 = vmatpush2.msra.mxu0 0.0
    %212 = vmatprep.subr.mxu0 0.0
    %213 = vmatpush2.msra.mxu0 0.0
    %214 = vmatprep.subr.mxu0 0.0
    %215 = vmatpush2.msra.mxu0 0.0
    %216 = vmatprep.subr.mxu0 0.0
    %217 = vmatpush2.msra.mxu0 0.0
    %218 = vmatprep.subr.mxu0 0.0
    %219 = vmatpush2.msra.mxu0 0.0
    %220 = vmatprep.subr.mxu0 0.0
    %221 = vmatpush2.msra.mxu0 0.0
    %222 = vmatprep.subr.mxu0 0.0
    %223 = vmatpush2.msra.mxu0 0.0
    %224 = vmatprep.subr.mxu0 0.0
    %225 = vmatpush2.msra.mxu0 0.0
    %226 = vmatprep.subr.mxu0 0.0
    %227 = vmatpush2.msra.mxu0 0.0
    %228 = vmatprep.subr.mxu0 0.0
    %229 = vmatpush2.msra.mxu0 0.0
    %230 = vmatprep.subr.mxu0 0.0
    %231 = vmatpush2.msra.mxu0 0.0
    %232 = vmatprep.subr.mxu0 0.0
    %233 = vmatpush2.msra.mxu0 0.0
    %234 = vmatprep.subr.mxu0 0.0
    %235 = vmatpush2.msra.mxu0 0.0
    %236 = vmatprep.subr.mxu0 0.0
    %237 = vmatpush2.msra.mxu0 0.0
    %238 = vmatprep.subr.mxu0 0.0
    %239 = vmatpush2.msra.mxu0 0.0
    %240 = vmatprep.subr.mxu0 0.0
    %241 = vmatpush2.msra.mxu0 0.0
    %242 = vmatprep.mubr.f32.mxu0 0.0
    %243 = vmatmul.mubr.f32.gmra.mxu0 %v169
    %v244 = vpop.f32.mrf.mxu0
    %v245 = vadd.f32 0.0, %v244
    %v246 = vpop.f32.mrf.mxu0
    %v247 = vadd.f32 0.0, %v246
    %248 = vdwg.mxu0
    %v249 = vld [vmem:[#allocation2] sm:$0xff]
    %250 = vmatprep.subr.mxu0 0.0
    %251 = vmatpush1.xpose.msra.mxu0 0.0
    %252 = vmatprep.subr.mxu0 0.0
    %253 = vmatpush1.xpose.msra.mxu0 0.0
    %254 = vmatprep.subr.mxu0 0.0
    %255 = vmatpush1.xpose.msra.mxu0 0.0
    %256 = vmatprep.subr.mxu0 0.0
    %257 = vmatpush1.xpose.msra.mxu0 0.0
    %258 = vmatprep.subr.mxu0 0.0
    %259 = vmatpush1.xpose.msra.mxu0 0.0
    %260 = vmatprep.subr.mxu0 0.0
    %261 = vmatpush1.xpose.msra.mxu0 0.0
    %262 = vmatprep.subr.mxu0 0.0
    %263 = vmatpush1.xpose.msra.mxu0 0.0
    %264 = vmatprep.subr.mxu0 0.0
    %265 = vmatpush1.xpose.msra.mxu0 0.0
    %266 = vmatprep.subr.mxu0 0.0
    %267 = vmatpush1.xpose.msra.mxu0 0.0
    %268 = vmatprep.subr.mxu0 0.0
    %269 = vmatpush1.xpose.msra.mxu0 0.0
    %270 = vmatprep.subr.mxu0 0.0
    %271 = vmatpush1.xpose.msra.mxu0 0.0
    %272 = vmatprep.subr.mxu0 0.0
    %273 = vmatpush1.xpose.msra.mxu0 0.0
    %274 = vmatprep.subr.mxu0 0.0
    %275 = vmatpush1.xpose.msra.mxu0 0.0
    %276 = vmatprep.subr.mxu0 0.0
    %277 = vmatpush1.xpose.msra.mxu0 0.0
    %278 = vmatprep.subr.mxu0 0.0
    %279 = vmatpush1.xpose.msra.mxu0 0.0
    %280 = vmatprep.subr.mxu0 0.0
    %281 = vmatpush1.xpose.msra.mxu0 %v245
    %282 = vmatprep.subr.mxu0 0.0
    %283 = vmatpush2.xpose.msra.mxu0 0.0
    %284 = vmatprep.subr.mxu0 0.0
    %285 = vmatpush2.xpose.msra.mxu0 0.0
    %286 = vmatprep.subr.mxu0 0.0
    %287 = vmatpush2.xpose.msra.mxu0 0.0
    %288 = vmatprep.subr.mxu0 0.0
    %289 = vmatpush2.xpose.msra.mxu0 0.0
    %290 = vmatprep.subr.mxu0 0.0
    %291 = vmatpush2.xpose.msra.mxu0 0.0
    %292 = vmatprep.subr.mxu0 0.0
    %293 = vmatpush2.xpose.msra.mxu0 0.0
    %294 = vmatprep.subr.mxu0 0.0
    %295 = vmatpush2.xpose.msra.mxu0 0.0
    %296 = vmatprep.subr.mxu0 0.0
    %297 = vmatpush2.xpose.msra.mxu0 0.0
    %298 = vmatprep.subr.mxu0 0.0
    %299 = vmatpush2.xpose.msra.mxu0 0.0
    %300 = vmatprep.subr.mxu0 0.0
    %301 = vmatpush2.xpose.msra.mxu0 0.0
    %302 = vmatprep.subr.mxu0 0.0
    %303 = vmatpush2.xpose.msra.mxu0 0.0
    %304 = vmatprep.subr.mxu0 0.0
    %305 = vmatpush2.xpose.msra.mxu0 0.0
    %306 = vmatprep.subr.mxu0 0.0
    %307 = vmatpush2.xpose.msra.mxu0 0.0
    %308 = vmatprep.subr.mxu0 0.0
    %309 = vmatpush2.xpose.msra.mxu0 0.0
    %310 = vmatprep.subr.mxu0 0.0
    %311 = vmatpush2.xpose.msra.mxu0 0.0
    %312 = vmatprep.subr.mxu0 0.0
    %313 = vmatpush2.xpose.msra.mxu0 0.0
    %314 = vmatprep.mubr.f32.mxu0 0.0
    %315 = vmatmul.mubr.f32.gmra.mxu0 %v249
    %v316 = vpop.f32.mrf.mxu0
    %v317 = vadd.f32 0.0, %v316
    %v318 = vpop.f32.mrf.mxu0
    %319 = vdwg.mxu0
    %v320 = vld [vmem:[#allocation4] sm:$0xff]
    %vm321 = vcmask 64512
    %v322 = vsel %vm321, %v317, -inf
    %323 = vmax.xlane.f32.xlu0 %v322
    %v324 = vpop.xlane.xlu0 %323
    %v325 = vmax.f32 %v320, %v324
    %v326 = vsub.f32 %v320, %v325
    %v327 = vmul.f32 %v326, 1.442695
    %v328 = vpow.pop %v327
    %330 = vset.pattern.permute.xlu0 0
    %331 = vperm.xlu0 %330, %v325
    %v332 = vpop.permute.xlu0 %331
    %v334 = vsub.f32 %v317, %v332
    %v335 = vmul.f32 %v334, 1.442695
    %v336 = vpow.pop %v335
    %v337 = vld [vmem:[#allocation3] sm:$0xff]
    %339 = vset.pattern.permute.xlu0 0
    %340 = vperm.xlu0 %339, %v328
    %v341 = vpop.permute.xlu0 %340
    %v343 = vmul.f32 %v341, %v337
    %v345 = vsel %vm321, %v336, 0
    %347 = vmatprep.subr.mxu0 0.0
    %348 = vmatpush1.msra.mxu0 0.0
    %349 = vmatprep.subr.mxu0 0.0
    %350 = vmatpush1.msra.mxu0 0.0
    %351 = vmatprep.subr.mxu0 0.0
    %352 = vmatpush1.msra.mxu0 0.0
    %353 = vmatprep.subr.mxu0 0.0
    %354 = vmatpush1.msra.mxu0 0.0
    %355 = vmatprep.subr.mxu0 0.0
    %356 = vmatpush1.msra.mxu0 0.0
    %357 = vmatprep.subr.mxu0 0.0
    %358 = vmatpush1.msra.mxu0 0.0
    %359 = vmatprep.subr.mxu0 0.0
    %360 = vmatpush1.msra.mxu0 0.0
    %361 = vmatprep.subr.mxu0 0.0
    %362 = vmatpush1.msra.mxu0 0.0
    %363 = vmatprep.subr.mxu0 0.0
    %364 = vmatpush1.msra.mxu0 0.0
    %365 = vmatprep.subr.mxu0 0.0
    %366 = vmatpush1.msra.mxu0 0.0
    %367 = vmatprep.subr.mxu0 0.0
    %368 = vmatpush1.msra.mxu0 0.0
    %369 = vmatprep.subr.mxu0 0.0
    %370 = vmatpush1.msra.mxu0 0.0
    %371 = vmatprep.subr.mxu0 0.0
    %372 = vmatpush1.msra.mxu0 0.0
    %373 = vmatprep.subr.mxu0 0.0
    %374 = vmatpush1.msra.mxu0 0.0
    %375 = vmatprep.subr.mxu0 0.0
    %376 = vmatpush1.msra.mxu0 0.0
    %377 = vmatprep.subr.mxu0 0.0
    %378 = vmatpush1.msra.mxu0 %v247
    %379 = vmatprep.subr.mxu0 0.0
    %380 = vmatpush2.msra.mxu0 0.0
    %381 = vmatprep.subr.mxu0 0.0
    %382 = vmatpush2.msra.mxu0 0.0
    %383 = vmatprep.subr.mxu0 0.0
    %384 = vmatpush2.msra.mxu0 0.0
    %385 = vmatprep.subr.mxu0 0.0
    %386 = vmatpush2.msra.mxu0 0.0
    %387 = vmatprep.subr.mxu0 0.0
    %388 = vmatpush2.msra.mxu0 0.0
    %389 = vmatprep.subr.mxu0 0.0
    %390 = vmatpush2.msra.mxu0 0.0
    %391 = vmatprep.subr.mxu0 0.0
    %392 = vmatpush2.msra.mxu0 0.0
    %393 = vmatprep.subr.mxu0 0.0
    %394 = vmatpush2.msra.mxu0 0.0
    %395 = vmatprep.subr.mxu0 0.0
    %396 = vmatpush2.msra.mxu0 0.0
    %397 = vmatprep.subr.mxu0 0.0
    %398 = vmatpush2.msra.mxu0 0.0
    %399 = vmatprep.subr.mxu0 0.0
    %400 = vmatpush2.msra.mxu0 0.0
    %401 = vmatprep.subr.mxu0 0.0
    %402 = vmatpush2.msra.mxu0 0.0
    %403 = vmatprep.subr.mxu0 0.0
    %404 = vmatpush2.msra.mxu0 0.0
    %405 = vmatprep.subr.mxu0 0.0
    %406 = vmatpush2.msra.mxu0 0.0
    %407 = vmatprep.subr.mxu0 0.0
    %408 = vmatpush2.msra.mxu0 0.0
    %409 = vmatprep.subr.mxu0 0.0
    %410 = vmatpush2.msra.mxu0 0.0
    %411 = vmatprep.mubr.f32.mxu0 0.0
    %412 = vmatmul.mubr.f32.gmra.mxu0 %v345
    %v413 = vpop.f32.mrf.mxu0
    %v414 = vadd.f32 0.0, %v413
    %v415 = vpop.f32.mrf.mxu0
    %416 = vdwg.mxu0
    %v417 = vadd.f32 %v343, %v414
    %418 = vst [vmem:[#allocation3] sm:$0xff] %v417
    %vm419 = vcmask 7168
    %420 = vst.msk [vmem:[#allocation4] sm:$0xff] %vm419, %v325
    // Predicated region
    $region38: #{tpu_custom_call.1} parent=1 // pred_check
      %p421 = pneg %p69
    $region39: #{tpu_custom_call.1} parent=1 // pred_check_branch
      %423 = sbr.rel (%p421) target = $region41
    $region40: #{tpu_custom_call.1} parent=1 // pred_region
      %v424 = vld [vmem:[#allocation3] sm:$0xff]
      %v425 = vrcp.pop %v424
      %v426 = vmul.f32 %v424, %v425
      %v427 = vsub.f32 2.0, %v426
      %v428 = vmul.f32 %v425, %v427
      %430 = vset.pattern.permute.xlu0 0
      %431 = vperm.xlu0 %430, %v428
      %v432 = vpop.permute.xlu0 %431
      %v434 = vmul.f32 %v424, %v432
      %435 = vst [vmem:[#allocation13] sm:$0xff] %v434
    $region41: #{tpu_custom_call.1} parent=1 // pred_fallthru
      _
    // Predicated region
    $region42: #{tpu_custom_call.1} parent=1 // pred_check
      _
    $region43: #{tpu_custom_call.1} parent=1 // pred_check_branch
      %437 = sbr.rel (0) target = $region45
    $region44: #{tpu_custom_call.1} parent=1 // pred_region
      %s439 = ssub.s32 128, 128
      %440 = vsyncadd [#allocation7], %s439
      %s442 = sshll.u32 [#allocation13], 4
      %s443 = int_to_ptr.vmem [resolvable:$true] %s442
      %445 = dma.vmem_to_hbm [thread:$0]  %s443, 128, %s4, [#allocation7]
    $region45: #{tpu_custom_call.1} parent=1 // pred_fallthru
      _
    // Predicated region
    $region46: #{tpu_custom_call.1} parent=1 // pred_check
      _
    $region47: #{tpu_custom_call.1} parent=1 // pred_check_branch
      %447 = sbr.rel (0) target = $region49
    $region48: #{tpu_custom_call.1} parent=1 // pred_region
      %448 = dma.done [#allocation7], 128
    $region49: #{tpu_custom_call.1} parent=1 // pred_fallthru
      _
    %449 = vsyncpa [#allocation6], 1
    %450 = vsyncpa [#allocation9], 1
    %451 = vsyncpa [#allocation12], 1
    %452 = vsyncpa [#allocation7], 1

</llo_original>
